<compile_context>
chip_gen: v6e
topology: v6e:2x2x1
jax: 0.10.0
libtpu: 0.0.40
codegen_flags: <defaults>
</compile_context>

<pallas_src>
import functools

import jax
import jax.numpy as jnp
import numpy as np
from jax import lax
from jax.experimental import pallas as pl
from jax.experimental.pallas import tpu as pltpu


# ------------------------------- Pallas kernels ------------------------------ #

def _stacked_relu_grad(x, w1t_ref, b1_ref, w2t_ref, b2_ref, w3_ref, w2b_ref):
    """Shared forward + hand-rolled backward of the stacked residual-ReLU MLP.

    Returns g_z1 = d(sum of both scalar heads)/d(z1_stacked), shape (TILE_B, 2H).
    All elementwise math is f32; matmul operands are in the weight dtype
    (f32 or bf16) with f32 accumulation.  w2t = W2_blk.T is used for the forward
    dot and w2b = W2_blk for the backward dot, so neither contraction needs an
    in-kernel transpose/relayout.
    """
    w1t = w1t_ref[...]                       # (Dtot, 2H)
    b1 = b1_ref[...]                         # (1, 2H) f32
    b2 = b2_ref[...]                         # (1, 2H) f32
    w3 = w3_ref[...]                         # (1, 2H) f32

    # forward (only the pre-activations are needed for the ReLU masks)
    z1 = jnp.dot(x, w1t, preferred_element_type=jnp.float32) + b1          # (B, 2H)
    h1 = jnp.maximum(z1, 0.0)
    z2 = jnp.dot(h1.astype(w2t_ref.dtype), w2t_ref[...],
                 preferred_element_type=jnp.float32) + b2                  # (B, 2H)

    # backward of y = w3 . (h1 + relu(z2)) + b3  w.r.t. z1
    g_z2 = jnp.where(z2 > 0.0, w3, 0.0)                                    # (B, 2H)
    g_h1 = w3 + jnp.dot(g_z2.astype(w2b_ref.dtype), w2b_ref[...],
                        preferred_element_type=jnp.float32)                # (B, 2H)
    g_z1 = jnp.where(z1 > 0.0, g_h1, 0.0)                                  # (B, 2H)
    return g_z1


def dhnn_fused_kernel(x_ref, w1t_ref, b1_ref, w2t_ref, b2_ref, w3_ref, w2b_ref,
                      w1b_ref, out_ref):
    """Default path: out = irr + rot in a single backward contraction."""
    g_z1 = _stacked_relu_grad(x_ref[...], w1t_ref, b1_ref, w2t_ref, b2_ref,
                              w3_ref, w2b_ref)
    w1b = w1b_ref[...]                       # (2H, Dx): [W1_d ; W1_h symplectic-folded]
    out_ref[...] = jnp.dot(g_z1.astype(w1b.dtype), w1b,
                           preferred_element_type=jnp.float32).astype(out_ref.dtype)


def dhnn_separate_kernel(x_ref, w1t_ref, b1_ref, w2t_ref, b2_ref, w3_ref, w2b_ref,
                         w1b_ref, irr_ref, rot_ref):
    """as_separate=True path: one block-diagonal backward dot, split at the store."""
    g_z1 = _stacked_relu_grad(x_ref[...], w1t_ref, b1_ref, w2t_ref, b2_ref,
                              w3_ref, w2b_ref)
    w1b = w1b_ref[...]                       # (2H, 2*Dx) block-diag [[W1_d,0],[0,W1_h_sym]]
    both = jnp.dot(g_z1.astype(w1b.dtype), w1b,
                   preferred_element_type=jnp.float32)                     # (B, 2*Dx)
    d_x = irr_ref.shape[-1]
    irr_ref[...] = both[:, :d_x].astype(irr_ref.dtype)
    rot_ref[...] = both[:, d_x:].astype(rot_ref.dtype)


# ------------------------------- Python wrapper ------------------------------ #

def _round_up(n, m):
    return ((n + m - 1) // m) * m


def _pack_params(params_d, params_h, d_x, mxu_dtype, as_separate):
    """Stack the two MLPs, ship both W2 orientations, fold the symplectic map."""
    H = params_d["W1"].shape[0]
    half = d_x // 2
    f32 = jnp.float32

    w1t = jnp.concatenate([params_d["W1"].T, params_h["W1"].T], axis=1)    # (Dtot, 2H)
    b1 = jnp.concatenate([params_d["b1"], params_h["b1"]]).reshape(1, 2 * H)
    b2 = jnp.concatenate([params_d["b2"], params_h["b2"]]).reshape(1, 2 * H)
    w3 = jnp.concatenate([params_d["W3"].reshape(-1),
                          params_h["W3"].reshape(-1)]).reshape(1, 2 * H)

    # Forward orientation (z2 = h1 @ W2_blk.T) and backward orientation
    # (g_h1 = g_z2 @ W2_blk) as separate operands -> no in-kernel transpose.
    w2t = jnp.zeros((2 * H, 2 * H), f32)
    w2t = w2t.at[:H, :H].set(params_d["W2"].T).at[H:, H:].set(params_h["W2"].T)
    w2b = jnp.zeros((2 * H, 2 * H), f32)
    w2b = w2b.at[:H, :H].set(params_d["W2"]).at[H:, H:].set(params_h["W2"])

    # Backward weight: gradient is taken w.r.t. x only (first d_x input columns).
    w1d_x = params_d["W1"][:, :d_x]                                        # (H, Dx)
    w1h_x = params_h["W1"][:, :d_x]                                        # (H, Dx)
    # rot = cat([dHdp, -dHdq]) == g_z1_h @ cat([W1_h[:, half:], -W1_h[:, :half]], 1)
    w1h_sym = jnp.concatenate([w1h_x[:, half:], -w1h_x[:, :half]], axis=1)
    if as_separate:
        w1b = jnp.zeros((2 * H, 2 * d_x), f32)
        w1b = w1b.at[:H, :d_x].set(w1d_x).at[H:, d_x:].set(w1h_sym)        # block-diag
    else:
        w1b = jnp.concatenate([w1d_x, w1h_sym], axis=0)                    # (2H, Dx)

    cast = lambda a: a.astype(mxu_dtype)
    return (cast(w1t), b1.astype(f32), cast(w2t), b2.astype(f32),
            w3.astype(f32), cast(w2b), cast(w1b))


def dhnn_forward(x, params_d, params_h, t=None, as_separate=False,
                 mxu_dtype=jnp.float32, tile_b_max=2048):
    """Pallas-backed DHNN forward.

    x: (B, Dx) float32, Dx even.  t: optional (B, Dt) extra input columns.
    mxu_dtype: jnp.float32 (default, exact; right choice on v5e) or
    jnp.bfloat16 (v6e/v7x MXU speedup; accumulation and elementwise stay f32).
    """
    d_x = x.shape[-1]
    assert d_x % 2 == 0, "x feature dim must be even for the q/p split"
    inputs = jnp.concatenate([x, t], axis=-1) if t is not None else x
    B, d_tot = inputs.shape
    H = params_d["W1"].shape[0]
    assert params_d["W1"].shape[1] == d_tot and params_h["W1"].shape[1] == d_tot
    H2 = 2 * H

    w1t, b1, w2t, b2, w3, w2b, w1b = _pack_params(
        params_d, params_h, d_x, mxu_dtype, as_separate)

    # Batch tiling: tile_b multiple of the sublane pack (8 f32 / 16 bf16);
    # weights stay resident across grid steps (constant index_map).
    sub = 16 if jnp.dtype(mxu_dtype) == jnp.dtype(jnp.bfloat16) else 8
    tile_b_max = _round_up(tile_b_max, sub)
    if B <= tile_b_max:
        tile_b = _round_up(B, sub)
        # v7x has 2 TensorCores: give the "parallel" batch axis >= 2 grid steps
        # whenever there are enough real rows to fill two tiles.
        if B >= 2 * sub:
            tile_b = min(tile_b, _round_up(pl.cdiv(B, 2), sub))
    else:
        tile_b = tile_b_max
    b_pad = _round_up(B, tile_b)
    if b_pad != B:
        inputs = jnp.pad(inputs, ((0, b_pad - B), (0, 0)))
    # Wrapper-side cast: on bf16 paths this halves the x HBM read and the
    # per-step input DMA, and removes repeated in-kernel VPU casts.
    inputs = inputs.astype(mxu_dtype)
    grid = (b_pad // tile_b,)

    def wspec(shape):
        # Constant block index -> fetched once, never re-DMA'd across grid steps.
        return pl.BlockSpec(shape, lambda i: (0, 0))

    d_back = 2 * d_x if as_separate else d_x
    in_specs = [
        pl.BlockSpec((tile_b, d_tot), lambda i: (i, 0)),    # x tile
        wspec((d_tot, H2)),                                 # w1t (stacked)
        wspec((1, H2)),                                     # b1
        wspec((H2, H2)),                                    # w2t (block-diag, fwd)
        wspec((1, H2)),                                     # b2
        wspec((1, H2)),                                     # w3 (stacked heads)
        wspec((H2, H2)),                                    # w2b (block-diag, bwd)
        wspec((H2, d_back)),                                # w1_back (sym folded)
    ]
    out_spec = pl.BlockSpec((tile_b, d_x), lambda i: (i, 0))

    in_itemsize = jnp.dtype(mxu_dtype).itemsize
    wbytes = int((w1t.size + w2t.size + w2b.size + w1b.size) * in_itemsize
                 + (b1.size + b2.size + w3.size) * 4)
    n_out = 2 if as_separate else 1
    cost = pl.CostEstimate(
        flops=int(2 * b_pad * (d_tot * H2 + 2 * H2 * H2 + H2 * d_back)),
        transcendentals=0,
        bytes_accessed=int(b_pad * (in_itemsize * d_tot + 4 * n_out * d_x)) + wbytes,
    )
    cparams = pltpu.CompilerParams(
        dimension_semantics=("parallel",),                  # shard batch on v7x cores
        vmem_limit_bytes=32 * 1024 * 1024,                  # fits v7x's 64 MiB physical
    )
    args = (inputs, w1t, b1, w2t, b2, w3, w2b, w1b)

    if as_separate:
        irr, rot = pl.pallas_call(
            dhnn_separate_kernel,
            out_shape=(jax.ShapeDtypeStruct((b_pad, d_x), x.dtype),
                       jax.ShapeDtypeStruct((b_pad, d_x), x.dtype)),
            grid=grid, in_specs=in_specs, out_specs=(out_spec, out_spec),
            compiler_params=cparams, cost_estimate=cost,
        )(*args)
        return irr[:B], rot[:B]

    out = pl.pallas_call(
        dhnn_fused_kernel,
        out_shape=jax.ShapeDtypeStruct((b_pad, d_x), x.dtype),
        grid=grid, in_specs=in_specs, out_specs=out_spec,
        compiler_params=cparams, cost_estimate=cost,
    )(*args)
    return out[:B]


# ----------------------------- deterministic params ----------------------------- #

def init_mlp_params(key, input_dim, output_dim, hidden_dim):
    """PyTorch-style uniform(-1/sqrt(fan_in), 1/sqrt(fan_in)) init, deterministic."""
    ks = jax.random.split(key, 6)

    def unif(k, shape, fan_in):
        bound = 1.0 / np.sqrt(fan_in)
        return jax.random.uniform(k, shape, jnp.float32, -bound, bound)

    return {
        "W1": unif(ks[0], (hidden_dim, input_dim), input_dim),
        "b1": unif(ks[1], (hidden_dim,), input_dim),
        "W2": unif(ks[2], (hidden_dim, hidden_dim), hidden_dim),
        "b2": unif(ks[3], (hidden_dim,), hidden_dim),
        "W3": unif(ks[4], (output_dim, hidden_dim), hidden_dim),
        "b3": unif(ks[5], (output_dim,), hidden_dim),
    }


# --------------------------- pure-JAX autodiff reference ------------------------ #

def _mlp_ref(p, inp):
    h1 = jax.nn.relu(inp @ p["W1"].T + p["b1"])
    h = h1 + jax.nn.relu(h1 @ p["W2"].T + p["b2"])
    return h @ p["W3"].T + p["b3"]


def dhnn_ref(x, params_d, params_h, t=None):
    def full(xx):
        return jnp.concatenate([xx, t], axis=-1) if t is not None else xx

    irr = jax.grad(lambda xx: _mlp_ref(params_d, full(xx)).sum())(x)
    rot_raw = jax.grad(lambda xx: _mlp_ref(params_h, full(xx)).sum())(x)
    half = x.shape[-1] // 2
    dHdq, dHdp = rot_raw[:, :half], rot_raw[:, half:]
    return irr + jnp.concatenate([dHdp, -dHdq], axis=-1)


# ------------------------------------- main ------------------------------------- #

if __name__ == "__main__":
    key = jax.random.PRNGKey(0)
    k_x, k_t, k_d, k_h = jax.random.split(key, 4)

    batch, input_dim, hidden_dim = 8, 16, 32   # input_dim even (q/p split)

    x = jax.random.normal(k_x, (batch, input_dim), jnp.float32)
    params_d = init_mlp_params(k_d, input_dim, 1, hidden_dim)
    params_h = init_mlp_params(k_h, input_dim, 1, hidden_dim)

    ref = jax.block_until_ready(dhnn_ref(x, params_d, params_h))

    # 1) fused default path (f32, exact)
    out = jax.block_until_ready(dhnn_forward(x, params_d, params_h))
    np.testing.assert_allclose(np.asarray(out), np.asarray(ref),
                               rtol=1e-5, atol=1e-5)

    # 2) as_separate path (single block-diagonal backward dot, split at store)
    irr, rot = dhnn_forward(x, params_d, params_h, as_separate=True)
    irr, rot = jax.block_until_ready((irr, rot))
    np.testing.assert_allclose(np.asarray(irr + rot), np.asarray(ref),
                               rtol=1e-5, atol=1e-5)

    # 3) optional time input t (extra input columns; gradient still w.r.t. x only)
    t = jax.random.normal(k_t, (batch, 2), jnp.float32)
    params_d_t = init_mlp_params(k_d, input_dim + 2, 1, hidden_dim)
    params_h_t = init_mlp_params(k_h, input_dim + 2, 1, hidden_dim)
    out_t = jax.block_until_ready(dhnn_forward(x, params_d_t, params_h_t, t=t))
    ref_t = jax.block_until_ready(dhnn_ref(x, params_d_t, params_h_t, t=t))
    np.testing.assert_allclose(np.asarray(out_t), np.asarray(ref_t),
                               rtol=1e-5, atol=1e-5)

    # 4) bf16 MXU path (v6e/v7x production setting): loose check only, since
    #    ReLU gate decisions can flip for |z| within bf16 rounding of zero.
    out_bf16 = jax.block_until_ready(
        dhnn_forward(x, params_d, params_h, mxu_dtype=jnp.bfloat16))
    assert np.isfinite(np.asarray(out_bf16)).all()
    assert float(np.mean(np.abs(np.asarray(out_bf16) - np.asarray(ref)))) < 0.05

    # 5) larger batch: exercises the >=2-step grid (v7x megacore) and padding
    xb = jax.random.normal(k_x, (1000, input_dim), jnp.float32)
    outb = jax.block_until_ready(dhnn_forward(xb, params_d, params_h))
    refb = jax.block_until_ready(dhnn_ref(xb, params_d, params_h))
    np.testing.assert_allclose(np.asarray(outb), np.asarray(refb),
                               rtol=1e-5, atol=1e-5)

    print("KERNEL_OK")
</pallas_src>

<mosaic_0001>
module attributes {stable_mosaic.version = 11 : i64} {
  func.func @dhnn_fused_kernel(%arg0: i32, %arg1: memref<8x16xf32, #tpu.memory_space<vmem>>, %arg2: memref<16x64xf32, #tpu.memory_space<vmem>>, %arg3: memref<1x64xf32, #tpu.memory_space<vmem>>, %arg4: memref<64x64xf32, #tpu.memory_space<vmem>>, %arg5: memref<1x64xf32, #tpu.memory_space<vmem>>, %arg6: memref<1x64xf32, #tpu.memory_space<vmem>>, %arg7: memref<64x64xf32, #tpu.memory_space<vmem>>, %arg8: memref<64x16xf32, #tpu.memory_space<vmem>>, %arg9: memref<8x16xf32, #tpu.memory_space<vmem>>) attributes {dimension_semantics = [#tpu.dimension_semantics<parallel>], iteration_bounds = array<i64: 1>, scalar_prefetch = 0 : i64, scratch_operands = 0 : i64, tpu.core_type = #tpu.core_type<tc>, window_params = [{transform_indices = @transform_0, window_bounds = array<i64: 8, 16>}, {pipeline_mode = #tpu.pipeline_mode<synchronous>, transform_indices = @transform_1, window_bounds = array<i64: 16, 64>}, {pipeline_mode = #tpu.pipeline_mode<synchronous>, transform_indices = @transform_2, window_bounds = array<i64: 1, 64>}, {pipeline_mode = #tpu.pipeline_mode<synchronous>, transform_indices = @transform_3, window_bounds = array<i64: 64, 64>}, {pipeline_mode = #tpu.pipeline_mode<synchronous>, transform_indices = @transform_4, window_bounds = array<i64: 1, 64>}, {pipeline_mode = #tpu.pipeline_mode<synchronous>, transform_indices = @transform_5, window_bounds = array<i64: 1, 64>}, {pipeline_mode = #tpu.pipeline_mode<synchronous>, transform_indices = @transform_6, window_bounds = array<i64: 64, 64>}, {pipeline_mode = #tpu.pipeline_mode<synchronous>, transform_indices = @transform_7, window_bounds = array<i64: 64, 16>}, {transform_indices = @transform_8, window_bounds = array<i64: 8, 16>}]} {
    %c0 = arith.constant 0 : index
    %c0_0 = arith.constant 0 : index
    %0 = vector.load %arg1[%c0, %c0_0] : memref<8x16xf32, #tpu.memory_space<vmem>>, vector<8x16xf32>
    %c0_1 = arith.constant 0 : index
    %c0_2 = arith.constant 0 : index
    %1 = vector.load %arg2[%c0_1, %c0_2] : memref<16x64xf32, #tpu.memory_space<vmem>>, vector<16x64xf32>
    %c0_3 = arith.constant 0 : index
    %c0_4 = arith.constant 0 : index
    %2 = vector.load %arg3[%c0_3, %c0_4] : memref<1x64xf32, #tpu.memory_space<vmem>>, vector<1x64xf32>
    %c0_5 = arith.constant 0 : index
    %c0_6 = arith.constant 0 : index
    %3 = vector.load %arg5[%c0_5, %c0_6] : memref<1x64xf32, #tpu.memory_space<vmem>>, vector<1x64xf32>
    %c0_7 = arith.constant 0 : index
    %c0_8 = arith.constant 0 : index
    %4 = vector.load %arg6[%c0_7, %c0_8] : memref<1x64xf32, #tpu.memory_space<vmem>>, vector<1x64xf32>
    %cst = arith.constant dense<0.000000e+00> : vector<8x64xf32>
    %5 = tpu.matmul %0, %1, %cst {dimension_numbers = #tpu.dot_dimension_numbers<[1], [0], [0], [1], [0, 0, 1, 1], [], []>} : vector<8x16xf32>, vector<16x64xf32>, vector<8x64xf32> -> vector<8x64xf32>
    %6 = vector.broadcast %2 : vector<1x64xf32> to vector<8x64xf32>
    %7 = arith.addf %5, %6 : vector<8x64xf32>
    %cst_9 = arith.constant 0.000000e+00 : f32
    %8 = vector.broadcast %cst_9 : f32 to vector<8x64xf32>
    %9 = arith.maximumf %7, %8 : vector<8x64xf32>
    %c0_10 = arith.constant 0 : index
    %c0_11 = arith.constant 0 : index
    %10 = vector.load %arg4[%c0_10, %c0_11] : memref<64x64xf32, #tpu.memory_space<vmem>>, vector<64x64xf32>
    %cst_12 = arith.constant dense<0.000000e+00> : vector<8x64xf32>
    %11 = tpu.matmul %9, %10, %cst_12 {dimension_numbers = #tpu.dot_dimension_numbers<[1], [0], [0], [1], [0, 0, 1, 1], [], []>} : vector<8x64xf32>, vector<64x64xf32>, vector<8x64xf32> -> vector<8x64xf32>
    %12 = vector.broadcast %3 : vector<1x64xf32> to vector<8x64xf32>
    %13 = arith.addf %11, %12 : vector<8x64xf32>
    %cst_13 = arith.constant 0.000000e+00 : f32
    %14 = vector.broadcast %cst_13 : f32 to vector<8x64xf32>
    %15 = arith.cmpf ogt, %13, %14 : vector<8x64xf32>
    %cst_14 = arith.constant 0.000000e+00 : f32
    %16 = vector.shape_cast %4 : vector<1x64xf32> to vector<1x64xf32>
    %17 = vector.broadcast %16 : vector<1x64xf32> to vector<8x64xf32>
    %18 = vector.broadcast %cst_14 : f32 to vector<8x64xf32>
    %19 = arith.select %15, %17, %18 : vector<8x64xi1>, vector<8x64xf32>
    %c0_15 = arith.constant 0 : index
    %c0_16 = arith.constant 0 : index
    %20 = vector.load %arg7[%c0_15, %c0_16] : memref<64x64xf32, #tpu.memory_space<vmem>>, vector<64x64xf32>
    %cst_17 = arith.constant dense<0.000000e+00> : vector<8x64xf32>
    %21 = tpu.matmul %19, %20, %cst_17 {dimension_numbers = #tpu.dot_dimension_numbers<[1], [0], [0], [1], [0, 0, 1, 1], [], []>} : vector<8x64xf32>, vector<64x64xf32>, vector<8x64xf32> -> vector<8x64xf32>
    %22 = vector.broadcast %4 : vector<1x64xf32> to vector<8x64xf32>
    %23 = arith.addf %22, %21 : vector<8x64xf32>
    %cst_18 = arith.constant 0.000000e+00 : f32
    %24 = vector.broadcast %cst_18 : f32 to vector<8x64xf32>
    %25 = arith.cmpf ogt, %7, %24 : vector<8x64xf32>
    %cst_19 = arith.constant 0.000000e+00 : f32
    %26 = vector.broadcast %cst_19 : f32 to vector<8x64xf32>
    %27 = arith.select %25, %23, %26 : vector<8x64xi1>, vector<8x64xf32>
    %c0_20 = arith.constant 0 : index
    %c0_21 = arith.constant 0 : index
    %28 = vector.load %arg8[%c0_20, %c0_21] : memref<64x16xf32, #tpu.memory_space<vmem>>, vector<64x16xf32>
    %cst_22 = arith.constant dense<0.000000e+00> : vector<8x16xf32>
    %29 = tpu.matmul %27, %28, %cst_22 {dimension_numbers = #tpu.dot_dimension_numbers<[1], [0], [0], [1], [0, 0, 1, 1], [], []>} : vector<8x64xf32>, vector<64x16xf32>, vector<8x16xf32> -> vector<8x16xf32>
    %c0_23 = arith.constant 0 : index
    %c0_24 = arith.constant 0 : index
    %30 = vector.load %arg9[%c0_23, %c0_24] : memref<8x16xf32, #tpu.memory_space<vmem>>, vector<8x16xf32>
    tpu.vector_store %arg9[%c0_23, %c0_24], %29 {strides = array<i32>} : memref<8x16xf32, #tpu.memory_space<vmem>>, vector<8x16xf32>,
    return
  }
  func.func @transform_0(%arg0: i32) -> (i32, i32) {
    %c0_i32 = arith.constant 0 : i32
    %c0_i32_0 = arith.constant 0 : i32
    return %arg0, %c0_i32 : i32, i32
  }
  func.func @transform_1(%arg0: i32) -> (i32, i32) {
    %c0_i32 = arith.constant 0 : i32
    %c0_i32_0 = arith.constant 0 : i32
    %c0_i32_1 = arith.constant 0 : i32
    return %c0_i32, %c0_i32_0 : i32, i32
  }
  func.func @transform_2(%arg0: i32) -> (i32, i32) {
    %c0_i32 = arith.constant 0 : i32
    %c0_i32_0 = arith.constant 0 : i32
    %c0_i32_1 = arith.constant 0 : i32
    return %c0_i32, %c0_i32_0 : i32, i32
  }
  func.func @transform_3(%arg0: i32) -> (i32, i32) {
    %c0_i32 = arith.constant 0 : i32
    %c0_i32_0 = arith.constant 0 : i32
    %c0_i32_1 = arith.constant 0 : i32
    return %c0_i32, %c0_i32_0 : i32, i32
  }
  func.func @transform_4(%arg0: i32) -> (i32, i32) {
    %c0_i32 = arith.constant 0 : i32
    %c0_i32_0 = arith.constant 0 : i32
    %c0_i32_1 = arith.constant 0 : i32
    return %c0_i32, %c0_i32_0 : i32, i32
  }
  func.func @transform_5(%arg0: i32) -> (i32, i32) {
    %c0_i32 = arith.constant 0 : i32
    %c0_i32_0 = arith.constant 0 : i32
    %c0_i32_1 = arith.constant 0 : i32
    return %c0_i32, %c0_i32_0 : i32, i32
  }
  func.func @transform_6(%arg0: i32) -> (i32, i32) {
    %c0_i32 = arith.constant 0 : i32
    %c0_i32_0 = arith.constant 0 : i32
    %c0_i32_1 = arith.constant 0 : i32
    return %c0_i32, %c0_i32_0 : i32, i32
  }
  func.func @transform_7(%arg0: i32) -> (i32, i32) {
    %c0_i32 = arith.constant 0 : i32
    %c0_i32_0 = arith.constant 0 : i32
    %c0_i32_1 = arith.constant 0 : i32
    return %c0_i32, %c0_i32_0 : i32, i32
  }
  func.func @transform_8(%arg0: i32) -> (i32, i32) {
    %c0_i32 = arith.constant 0 : i32
    %c0_i32_0 = arith.constant 0 : i32
    return %arg0, %c0_i32 : i32, i32
  }
}

</mosaic_0001>

<llo_original>
// kernel: tpu_custom_call.1
$region0: #{tpu_custom_call.1}
  #allocation0 [shape = 'u32[]', space=smem, size = 0x4, offset = 0x4, fixed_abs, tag = 'smem constant byte address 0x4 - core index']
  #allocation1 [shape = 'u32[144,128]{1,0:T(1,128)}', space=vmem, size = 0x12000, scoped, tag = 'internal scratch']
  %s0 = inlined_call_operand.hbm [shape: f32[8,16], index: 0, kind: input, shape index: {}]
  %s1 = inlined_call_operand.vmem [shape: f32[16,64], index: 1, kind: input, shape index: {}]
  %s2 = inlined_call_operand.vmem [shape: f32[1,64], index: 2, kind: input, shape index: {}]
  %s3 = inlined_call_operand.vmem [shape: f32[64,64], index: 3, kind: input, shape index: {}]
  %s4 = inlined_call_operand.vmem [shape: f32[1,64], index: 4, kind: input, shape index: {}]
  %s5 = inlined_call_operand.vmem [shape: f32[1,64], index: 5, kind: input, shape index: {}]
  %s6 = inlined_call_operand.hbm [shape: f32[64,64], index: 6, kind: input, shape index: {}]
  %s7 = inlined_call_operand.vmem [shape: f32[64,16], index: 7, kind: input, shape index: {}]
  %s8 = inlined_call_operand.hbm [shape: f32[8,16], index: 8, kind: output, shape index: {}]
  %s9 = sld [smem:[#allocation0]]
  $region50: #{tpu_custom_call.1} parent=0
    _
  %s11 = ssub.s32 1, %s9
  %s12 = scalar_select 0, %s11, %s9
  $region1: #{tpu_custom_call.1} parent=0
    #allocation2 [shape = 'u8[4096]{0}', space=vmem, size = 0x1000, scoped, tag = 'input window, operand 0, single buffered']
    #allocation3 [shape = 's32[1]{0}', space=sflag, size = 0x4, scoped, tag = 'scoped memory for tpu_custom_call.1']
    #allocation4 [shape = 's32[1]{0}', space=sflag, size = 0x4, scoped, tag = 'scoped memory for tpu_custom_call.1']
    #allocation5 [shape = 'u8[32768]{0}', space=vmem, size = 0x8000, scoped, tag = 'input window, operand 6, single buffered']
    #allocation6 [shape = 's32[1]{0}', space=sflag, size = 0x4, scoped, tag = 'scoped memory for tpu_custom_call.1']
    #allocation7 [shape = 'u8[4096]{0}', space=vmem, size = 0x1000, scoped, tag = 'output window, operand 0, single buffered']
    %13 = vsyncpa [#allocation3], 0
    %14 = vsyncpa [#allocation6], 0
    %15 = vsyncpa [#allocation4], 0
    // Predicated region
    $region2: #{tpu_custom_call.1} parent=1 // pred_check
      _
    $region3: #{tpu_custom_call.1} parent=1 // pred_check_branch
      %17 = sbr.rel (0) target = $region5
    $region4: #{tpu_custom_call.1} parent=1 // pred_region
      %s19 = ssub.s32 128, 128
      %20 = vsyncadd [#allocation3], %s19
      %s22 = sshll.u32 [#allocation2], 4
      %s23 = int_to_ptr.vmem [resolvable:$true] %s22
      %25 = dma.hbm_to_vmem [thread:$0]  %s0, 128, %s23, [#allocation3]
    $region5: #{tpu_custom_call.1} parent=1 // pred_fallthru
      _
    // Predicated region
    $region6: #{tpu_custom_call.1} parent=1 // pred_check
      _
    $region7: #{tpu_custom_call.1} parent=1 // pred_check_branch
      %27 = sbr.rel (0) target = $region9
    $region8: #{tpu_custom_call.1} parent=1 // pred_region
      _
    $region9: #{tpu_custom_call.1} parent=1 // pred_fallthru
      _
    // Predicated region
    $region10: #{tpu_custom_call.1} parent=1 // pred_check
      _
    $region11: #{tpu_custom_call.1} parent=1 // pred_check_branch
      %29 = sbr.rel (0) target = $region13
    $region12: #{tpu_custom_call.1} parent=1 // pred_region
      _
    $region13: #{tpu_custom_call.1} parent=1 // pred_fallthru
      _
    // Predicated region
    $region14: #{tpu_custom_call.1} parent=1 // pred_check
      _
    $region15: #{tpu_custom_call.1} parent=1 // pred_check_branch
      %31 = sbr.rel (0) target = $region17
    $region16: #{tpu_custom_call.1} parent=1 // pred_region
      _
    $region17: #{tpu_custom_call.1} parent=1 // pred_fallthru
      _
    // Predicated region
    $region18: #{tpu_custom_call.1} parent=1 // pred_check
      _
    $region19: #{tpu_custom_call.1} parent=1 // pred_check_branch
      %33 = sbr.rel (0) target = $region21
    $region20: #{tpu_custom_call.1} parent=1 // pred_region
      _
    $region21: #{tpu_custom_call.1} parent=1 // pred_fallthru
      _
    // Predicated region
    $region22: #{tpu_custom_call.1} parent=1 // pred_check
      _
    $region23: #{tpu_custom_call.1} parent=1 // pred_check_branch
      %35 = sbr.rel (0) target = $region25
    $region24: #{tpu_custom_call.1} parent=1 // pred_region
      _
    $region25: #{tpu_custom_call.1} parent=1 // pred_fallthru
      _
    // Predicated region
    $region26: #{tpu_custom_call.1} parent=1 // pred_check
      _
    $region27: #{tpu_custom_call.1} parent=1 // pred_check_branch
      %37 = sbr.rel (0) target = $region29
    $region28: #{tpu_custom_call.1} parent=1 // pred_region
      %s39 = ssub.s32 1024, 1024
      %40 = vsyncadd [#allocation6], %s39
      %s41 = sshll.u32 [#allocation5], 4
      %s42 = int_to_ptr.vmem [resolvable:$true] %s41
      %47 = dma.hbm_to_vmem [thread:$0]  %s6, 1024, %s42, [#allocation6], 128, 128, 8
    $region29: #{tpu_custom_call.1} parent=1 // pred_fallthru
      _
    // Predicated region
    $region30: #{tpu_custom_call.1} parent=1 // pred_check
      _
    $region31: #{tpu_custom_call.1} parent=1 // pred_check_branch
      %49 = sbr.rel (0) target = $region33
    $region32: #{tpu_custom_call.1} parent=1 // pred_region
      _
    $region33: #{tpu_custom_call.1} parent=1 // pred_fallthru
      _
    // Predicated region
    $region34: #{tpu_custom_call.1} parent=1 // pred_check
      _
    $region35: #{tpu_custom_call.1} parent=1 // pred_check_branch
      %51 = sbr.rel (0) target = $region37
    $region36: #{tpu_custom_call.1} parent=1 // pred_region
      %52 = dma.done [#allocation3], 128
    $region37: #{tpu_custom_call.1} parent=1 // pred_fallthru
      _
    // Predicated region
    $region38: #{tpu_custom_call.1} parent=1 // pred_check
      _
    $region39: #{tpu_custom_call.1} parent=1 // pred_check_branch
      %54 = sbr.rel (0) target = $region41
    $region40: #{tpu_custom_call.1} parent=1 // pred_region
      %55 = dma.done [#allocation6], 1024
    $region41: #{tpu_custom_call.1} parent=1 // pred_fallthru
      _
    %v56 = vld [vmem:[#allocation2] sm:$0xff]
    %v57 = vld [vmem:[%s1] sm:$0xff]
    %v58 = vld [vmem:[%s1 + $0x8] sm:$0xff]
    %v59 = vld [vmem:[%s2] sm:$0x1]
    %v60 = vld [vmem:[%s4] sm:$0x1]
    %v61 = vld [vmem:[%s5] sm:$0x1]
    %v63 = vlaneseq
    %v64 = vshrl.u32 %v63, 7
    %v65 = vsub.s32 0, %v64
    %v66 = vrot.slane %v59, %v65
    %vm68 = vcmask 130048
    %v70 = vsel %vm68, %v56, 0
    %72 = vmatprep.subr.mxu0 0.0
    %73 = vmatpush1.msra.mxu0 0.0
    %74 = vmatprep.subr.mxu0 0.0
    %75 = vmatpush1.msra.mxu0 0.0
    %76 = vmatprep.subr.mxu0 0.0
    %77 = vmatpush1.msra.mxu0 0.0
    %78 = vmatprep.subr.mxu0 0.0
    %79 = vmatpush1.msra.mxu0 0.0
    %80 = vmatprep.subr.mxu0 0.0
    %81 = vmatpush1.msra.mxu0 0.0
    %82 = vmatprep.subr.mxu0 0.0
    %83 = vmatpush1.msra.mxu0 0.0
    %84 = vmatprep.subr.mxu0 0.0
    %85 = vmatpush1.msra.mxu0 0.0
    %86 = vmatprep.subr.mxu0 0.0
    %87 = vmatpush1.msra.mxu0 0.0
    %88 = vmatprep.subr.mxu0 0.0
    %89 = vmatpush1.msra.mxu0 0.0
    %90 = vmatprep.subr.mxu0 0.0
    %91 = vmatpush1.msra.mxu0 0.0
    %92 = vmatprep.subr.mxu0 0.0
    %93 = vmatpush1.msra.mxu0 0.0
    %94 = vmatprep.subr.mxu0 0.0
    %95 = vmatpush1.msra.mxu0 0.0
    %96 = vmatprep.subr.mxu0 0.0
    %97 = vmatpush1.msra.mxu0 0.0
    %98 = vmatprep.subr.mxu0 0.0
    %99 = vmatpush1.msra.mxu0 0.0
    %100 = vmatprep.subr.mxu0 0.0
    %101 = vmatpush1.msra.mxu0 %v58
    %102 = vmatprep.subr.mxu0 0.0
    %103 = vmatpush1.msra.mxu0 %v57
    %104 = vmatprep.subr.mxu0 0.0
    %105 = vmatpush2.msra.mxu0 0.0
    %106 = vmatprep.subr.mxu0 0.0
    %107 = vmatpush2.msra.mxu0 0.0
    %108 = vmatprep.subr.mxu0 0.0
    %109 = vmatpush2.msra.mxu0 0.0
    %110 = vmatprep.subr.mxu0 0.0
    %111 = vmatpush2.msra.mxu0 0.0
    %112 = vmatprep.subr.mxu0 0.0
    %113 = vmatpush2.msra.mxu0 0.0
    %114 = vmatprep.subr.mxu0 0.0
    %115 = vmatpush2.msra.mxu0 0.0
    %116 = vmatprep.subr.mxu0 0.0
    %117 = vmatpush2.msra.mxu0 0.0
    %118 = vmatprep.subr.mxu0 0.0
    %119 = vmatpush2.msra.mxu0 0.0
    %120 = vmatprep.subr.mxu0 0.0
    %121 = vmatpush2.msra.mxu0 0.0
    %122 = vmatprep.subr.mxu0 0.0
    %123 = vmatpush2.msra.mxu0 0.0
    %124 = vmatprep.subr.mxu0 0.0
    %125 = vmatpush2.msra.mxu0 0.0
    %126 = vmatprep.subr.mxu0 0.0
    %127 = vmatpush2.msra.mxu0 0.0
    %128 = vmatprep.subr.mxu0 0.0
    %129 = vmatpush2.msra.mxu0 0.0
    %130 = vmatprep.subr.mxu0 0.0
    %131 = vmatpush2.msra.mxu0 0.0
    %132 = vmatprep.subr.mxu0 0.0
    %133 = vmatpush2.msra.mxu0 0.0
    %134 = vmatprep.subr.mxu0 0.0
    %135 = vmatpush2.msra.mxu0 0.0
    %136 = vmatprep.mubr.f32.mxu0 0.0
    %137 = vmatmul.mubr.f32.gmra.mxu0 %v70
    %v138 = vpop.f32.mrf.mxu0
    %v139 = vadd.f32 %v66, %v138
    %v140 = vpop.f32.mrf.mxu0
    %141 = vdwg.mxu0
    %v142 = vmax.f32 %v139, 0.0
    %v143 = vld [vmem:[%s3] sm:$0xff]
    %v144 = vld [vmem:[%s3 + $0x8] sm:$0xff]
    %v145 = vld [vmem:[%s3 + $0x10] sm:$0xff]
    %v146 = vld [vmem:[%s3 + $0x18] sm:$0xff]
    %v147 = vld [vmem:[%s3 + $0x20] sm:$0xff]
    %v148 = vld [vmem:[%s3 + $0x28] sm:$0xff]
    %v149 = vld [vmem:[%s3 + $0x30] sm:$0xff]
    %v150 = vld [vmem:[%s3 + $0x38] sm:$0xff]
    %v152 = vlaneseq
    %v153 = vshrl.u32 %v152, 7
    %v154 = vsub.s32 0, %v153
    %v155 = vrot.slane %v60, %v154
    %vm157 = vcmask 523264
    %v159 = vsel %vm157, %v142, 0
    %161 = vmatprep.subr.mxu0 0.0
    %162 = vmatpush1.msra.mxu0 0.0
    %163 = vmatprep.subr.mxu0 0.0
    %164 = vmatpush1.msra.mxu0 0.0
    %165 = vmatprep.subr.mxu0 0.0
    %166 = vmatpush1.msra.mxu0 0.0
    %167 = vmatprep.subr.mxu0 0.0
    %168 = vmatpush1.msra.mxu0 0.0
    %169 = vmatprep.subr.mxu0 0.0
    %170 = vmatpush1.msra.mxu0 0.0
    %171 = vmatprep.subr.mxu0 0.0
    %172 = vmatpush1.msra.mxu0 0.0
    %173 = vmatprep.subr.mxu0 0.0
    %174 = vmatpush1.msra.mxu0 0.0
    %175 = vmatprep.subr.mxu0 0.0
    %176 = vmatpush1.msra.mxu0 0.0
    %177 = vmatprep.subr.mxu0 0.0
    %178 = vmatpush1.msra.mxu0 %v150
    %179 = vmatprep.subr.mxu0 0.0
    %180 = vmatpush1.msra.mxu0 %v149
    %181 = vmatprep.subr.mxu0 0.0
    %182 = vmatpush1.msra.mxu0 %v148
    %183 = vmatprep.subr.mxu0 0.0
    %184 = vmatpush1.msra.mxu0 %v147
    %185 = vmatprep.subr.mxu0 0.0
    %186 = vmatpush1.msra.mxu0 %v146
    %187 = vmatprep.subr.mxu0 0.0
    %188 = vmatpush1.msra.mxu0 %v145
    %189 = vmatprep.subr.mxu0 0.0
    %190 = vmatpush1.msra.mxu0 %v144
    %191 = vmatprep.subr.mxu0 0.0
    %192 = vmatpush1.msra.mxu0 %v143
    %193 = vmatprep.subr.mxu0 0.0
    %194 = vmatpush2.msra.mxu0 0.0
    %195 = vmatprep.subr.mxu0 0.0
    %196 = vmatpush2.msra.mxu0 0.0
    %197 = vmatprep.subr.mxu0 0.0
    %198 = vmatpush2.msra.mxu0 0.0
    %199 = vmatprep.subr.mxu0 0.0
    %200 = vmatpush2.msra.mxu0 0.0
    %201 = vmatprep.subr.mxu0 0.0
    %202 = vmatpush2.msra.mxu0 0.0
    %203 = vmatprep.subr.mxu0 0.0
    %204 = vmatpush2.msra.mxu0 0.0
    %205 = vmatprep.subr.mxu0 0.0
    %206 = vmatpush2.msra.mxu0 0.0
    %207 = vmatprep.subr.mxu0 0.0
    %208 = vmatpush2.msra.mxu0 0.0
    %209 = vmatprep.subr.mxu0 0.0
    %210 = vmatpush2.msra.mxu0 0.0
    %211 = vmatprep.subr.mxu0 0.0
    %212 = vmatpush2.msra.mxu0 0.0
    %213 = vmatprep.subr.mxu0 0.0
    %214 = vmatpush2.msra.mxu0 0.0
    %215 = vmatprep.subr.mxu0 0.0
    %216 = vmatpush2.msra.mxu0 0.0
    %217 = vmatprep.subr.mxu0 0.0
    %218 = vmatpush2.msra.mxu0 0.0
    %219 = vmatprep.subr.mxu0 0.0
    %220 = vmatpush2.msra.mxu0 0.0
    %221 = vmatprep.subr.mxu0 0.0
    %222 = vmatpush2.msra.mxu0 0.0
    %223 = vmatprep.subr.mxu0 0.0
    %224 = vmatpush2.msra.mxu0 0.0
    %225 = vmatprep.mubr.f32.mxu0 0.0
    %226 = vmatmul.mubr.f32.gmra.mxu0 %v159
    %v227 = vpop.f32.mrf.mxu0
    %v228 = vadd.f32 %v155, %v227
    %v229 = vpop.f32.mrf.mxu0
    %230 = vdwg.mxu0
    %vm231 = vcmp.gt.f32.partialorder %v228, 0.0
    %v233 = vlaneseq
    %v234 = vshrl.u32 %v233, 7
    %v235 = vsub.s32 0, %v234
    %v236 = vrot.slane %v61, %v235
    %v238 = vsel %vm231, %v236, 0.0
    %v239 = vld [vmem:[#allocation5] sm:$0xff]
    %v240 = vld [vmem:[#allocation5 + $0x8] sm:$0xff]
    %v241 = vld [vmem:[#allocation5 + $0x10] sm:$0xff]
    %v242 = vld [vmem:[#allocation5 + $0x18] sm:$0xff]
    %v243 = vld [vmem:[#allocation5 + $0x20] sm:$0xff]
    %v244 = vld [vmem:[#allocation5 + $0x28] sm:$0xff]
    %v245 = vld [vmem:[#allocation5 + $0x30] sm:$0xff]
    %v246 = vld [vmem:[#allocation5 + $0x38] sm:$0xff]
    %v248 = vsel %vm157, %v238, 0
    %250 = vmatprep.subr.mxu0 0.0
    %251 = vmatpush1.msra.mxu0 0.0
    %252 = vmatprep.subr.mxu0 0.0
    %253 = vmatpush1.msra.mxu0 0.0
    %254 = vmatprep.subr.mxu0 0.0
    %255 = vmatpush1.msra.mxu0 0.0
    %256 = vmatprep.subr.mxu0 0.0
    %257 = vmatpush1.msra.mxu0 0.0
    %258 = vmatprep.subr.mxu0 0.0
    %259 = vmatpush1.msra.mxu0 0.0
    %260 = vmatprep.subr.mxu0 0.0
    %261 = vmatpush1.msra.mxu0 0.0
    %262 = vmatprep.subr.mxu0 0.0
    %263 = vmatpush1.msra.mxu0 0.0
    %264 = vmatprep.subr.mxu0 0.0
    %265 = vmatpush1.msra.mxu0 0.0
    %266 = vmatprep.subr.mxu0 0.0
    %267 = vmatpush1.msra.mxu0 %v246
    %268 = vmatprep.subr.mxu0 0.0
    %269 = vmatpush1.msra.mxu0 %v245
    %270 = vmatprep.subr.mxu0 0.0
    %271 = vmatpush1.msra.mxu0 %v244
    %272 = vmatprep.subr.mxu0 0.0
    %273 = vmatpush1.msra.mxu0 %v243
    %274 = vmatprep.subr.mxu0 0.0
    %275 = vmatpush1.msra.mxu0 %v242
    %276 = vmatprep.subr.mxu0 0.0
    %277 = vmatpush1.msra.mxu0 %v241
    %278 = vmatprep.subr.mxu0 0.0
    %279 = vmatpush1.msra.mxu0 %v240
    %280 = vmatprep.subr.mxu0 0.0
    %281 = vmatpush1.msra.mxu0 %v239
    %282 = vmatprep.subr.mxu0 0.0
    %283 = vmatpush2.msra.mxu0 0.0
    %284 = vmatprep.subr.mxu0 0.0
    %285 = vmatpush2.msra.mxu0 0.0
    %286 = vmatprep.subr.mxu0 0.0
    %287 = vmatpush2.msra.mxu0 0.0
    %288 = vmatprep.subr.mxu0 0.0
    %289 = vmatpush2.msra.mxu0 0.0
    %290 = vmatprep.subr.mxu0 0.0
    %291 = vmatpush2.msra.mxu0 0.0
    %292 = vmatprep.subr.mxu0 0.0
    %293 = vmatpush2.msra.mxu0 0.0
    %294 = vmatprep.subr.mxu0 0.0
    %295 = vmatpush2.msra.mxu0 0.0
    %296 = vmatprep.subr.mxu0 0.0
    %297 = vmatpush2.msra.mxu0 0.0
    %298 = vmatprep.subr.mxu0 0.0
    %299 = vmatpush2.msra.mxu0 0.0
    %300 = vmatprep.subr.mxu0 0.0
    %301 = vmatpush2.msra.mxu0 0.0
    %302 = vmatprep.subr.mxu0 0.0
    %303 = vmatpush2.msra.mxu0 0.0
    %304 = vmatprep.subr.mxu0 0.0
    %305 = vmatpush2.msra.mxu0 0.0
    %306 = vmatprep.subr.mxu0 0.0
    %307 = vmatpush2.msra.mxu0 0.0
    %308 = vmatprep.subr.mxu0 0.0
    %309 = vmatpush2.msra.mxu0 0.0
    %310 = vmatprep.subr.mxu0 0.0
    %311 = vmatpush2.msra.mxu0 0.0
    %312 = vmatprep.subr.mxu0 0.0
    %313 = vmatpush2.msra.mxu0 0.0
    %314 = vmatprep.mubr.f32.mxu0 0.0
    %315 = vmatmul.mubr.f32.gmra.mxu0 %v248
    %v316 = vpop.f32.mrf.mxu0
    %v317 = vadd.f32 0.0, %v316
    %v318 = vpop.f32.mrf.mxu0
    %319 = vdwg.mxu0
    %v320 = vadd.f32 %v236, %v317
    %vm321 = vcmp.gt.f32.partialorder %v139, 0.0
    %v322 = vsel %vm321, %v320, 0.0
    %v323 = vld [vmem:[%s7] sm:$0xff]
    %v324 = vld [vmem:[%s7 + $0x8] sm:$0xff]
    %v325 = vld [vmem:[%s7 + $0x10] sm:$0xff]
    %v326 = vld [vmem:[%s7 + $0x18] sm:$0xff]
    %v327 = vld [vmem:[%s7 + $0x20] sm:$0xff]
    %v328 = vld [vmem:[%s7 + $0x28] sm:$0xff]
    %v329 = vld [vmem:[%s7 + $0x30] sm:$0xff]
    %v330 = vld [vmem:[%s7 + $0x38] sm:$0xff]
    %v332 = vsel %vm157, %v322, 0
    %334 = vmatprep.subr.mxu0 0.0
    %335 = vmatpush1.msra.mxu0 0.0
    %336 = vmatprep.subr.mxu0 0.0
    %337 = vmatpush1.msra.mxu0 0.0
    %338 = vmatprep.subr.mxu0 0.0
    %339 = vmatpush1.msra.mxu0 0.0
    %340 = vmatprep.subr.mxu0 0.0
    %341 = vmatpush1.msra.mxu0 0.0
    %342 = vmatprep.subr.mxu0 0.0
    %343 = vmatpush1.msra.mxu0 0.0
    %344 = vmatprep.subr.mxu0 0.0
    %345 = vmatpush1.msra.mxu0 0.0
    %346 = vmatprep.subr.mxu0 0.0
    %347 = vmatpush1.msra.mxu0 0.0
    %348 = vmatprep.subr.mxu0 0.0
    %349 = vmatpush1.msra.mxu0 0.0
    %350 = vmatprep.subr.mxu0 0.0
    %351 = vmatpush1.msra.mxu0 %v330
    %352 = vmatprep.subr.mxu0 0.0
    %353 = vmatpush1.msra.mxu0 %v329
    %354 = vmatprep.subr.mxu0 0.0
    %355 = vmatpush1.msra.mxu0 %v328
    %356 = vmatprep.subr.mxu0 0.0
    %357 = vmatpush1.msra.mxu0 %v327
    %358 = vmatprep.subr.mxu0 0.0
    %359 = vmatpush1.msra.mxu0 %v326
    %360 = vmatprep.subr.mxu0 0.0
    %361 = vmatpush1.msra.mxu0 %v325
    %362 = vmatprep.subr.mxu0 0.0
    %363 = vmatpush1.msra.mxu0 %v324
    %364 = vmatprep.subr.mxu0 0.0
    %365 = vmatpush1.msra.mxu0 %v323
    %366 = vmatprep.subr.mxu0 0.0
    %367 = vmatpush2.msra.mxu0 0.0
    %368 = vmatprep.subr.mxu0 0.0
    %369 = vmatpush2.msra.mxu0 0.0
    %370 = vmatprep.subr.mxu0 0.0
    %371 = vmatpush2.msra.mxu0 0.0
    %372 = vmatprep.subr.mxu0 0.0
    %373 = vmatpush2.msra.mxu0 0.0
    %374 = vmatprep.subr.mxu0 0.0
    %375 = vmatpush2.msra.mxu0 0.0
    %376 = vmatprep.subr.mxu0 0.0
    %377 = vmatpush2.msra.mxu0 0.0
    %378 = vmatprep.subr.mxu0 0.0
    %379 = vmatpush2.msra.mxu0 0.0
    %380 = vmatprep.subr.mxu0 0.0
    %381 = vmatpush2.msra.mxu0 0.0
    %382 = vmatprep.subr.mxu0 0.0
    %383 = vmatpush2.msra.mxu0 0.0
    %384 = vmatprep.subr.mxu0 0.0
    %385 = vmatpush2.msra.mxu0 0.0
    %386 = vmatprep.subr.mxu0 0.0
    %387 = vmatpush2.msra.mxu0 0.0
    %388 = vmatprep.subr.mxu0 0.0
    %389 = vmatpush2.msra.mxu0 0.0
    %390 = vmatprep.subr.mxu0 0.0
    %391 = vmatpush2.msra.mxu0 0.0
    %392 = vmatprep.subr.mxu0 0.0
    %393 = vmatpush2.msra.mxu0 0.0
    %394 = vmatprep.subr.mxu0 0.0
    %395 = vmatpush2.msra.mxu0 0.0
    %396 = vmatprep.subr.mxu0 0.0
    %397 = vmatpush2.msra.mxu0 0.0
    %398 = vmatprep.mubr.f32.mxu0 0.0
    %399 = vmatmul.mubr.f32.gmra.mxu0 %v332
    %v400 = vpop.f32.mrf.mxu0
    %v401 = vadd.f32 0.0, %v400
    %v402 = vpop.f32.mrf.mxu0
    %403 = vdwg.mxu0
    %404 = vst.msk [vmem:[#allocation7] sm:$0xff] %vm68, %v401
    // Predicated region
    $region42: #{tpu_custom_call.1} parent=1 // pred_check
      _
    $region43: #{tpu_custom_call.1} parent=1 // pred_check_branch
      %406 = sbr.rel (0) target = $region45
    $region44: #{tpu_custom_call.1} parent=1 // pred_region
      %s408 = ssub.s32 128, 128
      %409 = vsyncadd [#allocation4], %s408
      %s411 = sshll.u32 [#allocation7], 4
      %s412 = int_to_ptr.vmem [resolvable:$true] %s411
      %414 = dma.vmem_to_hbm [thread:$0]  %s412, 128, %s8, [#allocation4]
    $region45: #{tpu_custom_call.1} parent=1 // pred_fallthru
      _
    // Predicated region
    $region46: #{tpu_custom_call.1} parent=1 // pred_check
      _
    $region47: #{tpu_custom_call.1} parent=1 // pred_check_branch
      %416 = sbr.rel (0) target = $region49
    $region48: #{tpu_custom_call.1} parent=1 // pred_region
      %417 = dma.done [#allocation4], 128
    $region49: #{tpu_custom_call.1} parent=1 // pred_fallthru
      _
    %418 = vsyncpa [#allocation3], 1
    %419 = vsyncpa [#allocation6], 1
    %420 = vsyncpa [#allocation4], 1

</llo_original>
